<compile_context>
chip_gen: v5e
topology: v5e:2x2
jax: 0.10.0
libtpu: 0.0.40
codegen_flags: <defaults>
</compile_context>

<pallas_src>
import functools

import jax
import jax.numpy as jnp
from jax import lax
from jax.experimental import pallas as pl
from jax.experimental.pallas import tpu as pltpu


def _round_up(v: int, m: int) -> int:
    return (v + m - 1) // m * m


# ---------------------------------------------------------------------------
# Kernel 1: RBF similarity + unnormalized graph Laplacian (per batch element).
# ---------------------------------------------------------------------------
def _rbf_laplacian_kernel(x_ref, l_ref, *, gamma, n_valid):
    """x_ref: (Np, Dp) zero-padded points. l_ref: (Np, Np) Laplacian block."""
    x = x_ref[...].astype(jnp.float32)                                   # (Np, Dp)
    sq = jnp.sum(x * x, axis=-1)                                         # (Np,)
    # Transpose folded into the MXU contraction: gram = x @ x.T without
    # materializing x.T (contract the last dim of both operands).
    gram = lax.dot_general(x, x, (((1,), (1,)), ((), ())),
                           preferred_element_type=jnp.float32)           # (Np, Np)
    d2 = jnp.maximum(sq[:, None] + sq[None, :] - 2.0 * gram, 0.0)
    sim = jnp.exp(-gamma * d2)                                           # RBF similarity

    # Small (Np,1)/(1,Np) iotas; the broadcast happens inside the compares.
    row_ids = lax.broadcasted_iota(jnp.int32, (x.shape[0], 1), 0)        # (Np, 1)
    col_ids = lax.broadcasted_iota(jnp.int32, (1, x.shape[0]), 1)        # (1, Np)

    # Mask padded columns out of the similarity so the degree row-sum is exact.
    # (Padded rows carry don't-care values; the wrapper slices them off before eigh.)
    sim = jnp.where(col_ids < n_valid, sim, 0.0)
    deg = jnp.sum(sim, axis=-1, keepdims=True)                           # (Np, 1)
    l_ref[...] = jnp.where(row_ids == col_ids, deg - sim, -sim)          # L = D - S


def rbf_laplacian(x, gamma):
    b, n, d = x.shape
    n_pad = _round_up(n, 128)    # lane-dense output block (and clean MXU shapes)
    d_pad = _round_up(d, 128)    # zero padding of D is distance-preserving
    xp = jnp.pad(x.astype(jnp.float32), ((0, 0), (0, n_pad - n), (0, d_pad - d)))

    lap_padded = pl.pallas_call(
        functools.partial(_rbf_laplacian_kernel, gamma=float(gamma), n_valid=n),
        out_shape=jax.ShapeDtypeStruct((b, n_pad, n_pad), jnp.float32),
        grid_spec=pltpu.PrefetchScalarGridSpec(
            num_scalar_prefetch=0,
            grid=(b,),
            # Leading batch dim squeezed (None) -> kernel sees clean 2-D slabs.
            in_specs=[pl.BlockSpec((None, n_pad, d_pad), lambda i: (i, 0, 0))],
            out_specs=pl.BlockSpec((None, n_pad, n_pad), lambda i: (i, 0, 0)),
        ),
        # TODO(synk): on v7x (2 TCs/chip) pltpu.CORE_PARALLEL on this axis would
        # shard the two batch steps across TensorCores; plain "parallel" kept
        # for portability across v5e/v6e single-TC parts.
        compiler_params=pltpu.CompilerParams(dimension_semantics=("parallel",)),
    )(xp)
    return lap_padded[:, :n, :n]


# ---------------------------------------------------------------------------
# Kernel 2: Lloyd's k-means on the spectral embedding (per batch element).
# Embedding is passed transposed as (C, N) so N sits on the lane axis.
# ---------------------------------------------------------------------------
def _kmeans_kernel(f_ref, a_ref, *, n_clusters, n_iters):
    feats_t = f_ref[...].astype(jnp.float32)                             # (C, N)
    c_dim, n = feats_t.shape
    k = n_clusters

    def assign(cents):                                                   # cents: (C, K)
        # dist[k, :] = sum_c (cents[c, k] - feats_t[c, :])^2
        # Static unroll over the tiny C dim -> pure VPU broadcast FMAs,
        # no MXU push/pop latency on the Lloyd-loop critical path.
        diff = cents[0, :, None] - feats_t[0, None, :]                   # (K, N)
        dist = diff * diff
        for c in range(1, c_dim):
            diff = cents[c, :, None] - feats_t[c, None, :]
            dist = dist + diff * diff
        # argmin over K as unrolled compare/select across sublane rows.
        best_d = dist[0:1]                                               # (1, N)
        best_i = jnp.zeros((1, n), jnp.int32)
        for kk in range(1, k):
            dk = dist[kk:kk + 1]
            take = dk < best_d          # strict '<': smallest index wins ties
            best_d = jnp.where(take, dk, best_d)
            best_i = jnp.where(take, jnp.int32(kk), best_i)
        return best_i                                                    # (1, N)

    # Hoisted out of the (unrolled) Lloyd loop: constant cluster-id iota.
    kidx = lax.broadcasted_iota(jnp.int32, (k, n), 0)                    # (K, N)

    def body(_, cents):
        labels = assign(cents)                                           # (1, N)
        one_hot = (labels == kidx).astype(jnp.float32)                   # (K, N)
        counts = jnp.sum(one_hot, axis=-1)                               # (K,)
        sums = jnp.sum(feats_t[:, None, :] * one_hot[None, :, :],
                       axis=-1)                                          # (C, K)
        keep = counts[None, :] > 0.5
        return jnp.where(keep, sums / jnp.maximum(counts[None, :], 1.0), cents)

    # TODO(synk): sklearn KMeans uses randomized k-means++ init / n_init
    # restarts / convergence checks; here: deterministic first-K-points init,
    # fixed Lloyd iterations, empty clusters keep their previous centroid.
    cents0 = feats_t[:, :k]                                              # (C, K)
    cents = lax.fori_loop(0, n_iters, body, cents0, unroll=True)
    a_ref[...] = assign(cents)                                           # lane-dense (1, N)


def kmeans_assign(feats_t, n_clusters, n_iters=10):
    b, c, n = feats_t.shape
    return pl.pallas_call(
        functools.partial(_kmeans_kernel, n_clusters=n_clusters, n_iters=n_iters),
        out_shape=jax.ShapeDtypeStruct((b, n), jnp.int32),
        grid_spec=pltpu.PrefetchScalarGridSpec(
            num_scalar_prefetch=0,
            grid=(b,),
            in_specs=[pl.BlockSpec((None, c, n), lambda i: (i, 0, 0))],
            out_specs=pl.BlockSpec((1, n), lambda i: (i, 0)),
        ),
        compiler_params=pltpu.CompilerParams(dimension_semantics=("parallel",)),
    )(feats_t)


# ---------------------------------------------------------------------------
# Forward pass glue.
# ---------------------------------------------------------------------------
def spectral_clustering_forward(batch, cluster_number, gamma=1.0):
    """batch: [B, N, D] -> (node_features [B, N, cluster_number], assignments [B, N])."""
    lap = rbf_laplacian(batch, gamma)                                    # Pallas hot path
    # TODO(synk): symmetric eigendecomposition has no Pallas equivalent; use XLA eigh.
    _, eigvecs = jnp.linalg.eigh(lap)                                    # ascending eigvals
    node_features = eigvecs[:, :, :cluster_number].astype(jnp.float32)   # (B, N, C)
    # Flip layout so N is the lane dim inside the k-means kernel.
    feats_t = jnp.transpose(node_features, (0, 2, 1))                    # (B, C, N)
    assignments = kmeans_assign(feats_t, cluster_number)                 # Pallas hot path
    return node_features, assignments


if __name__ == "__main__":
    # Shapes match the PyTorch module constants: batch_size=2, num_nodes=116,
    # feature_dim=116; cluster_number kept small.
    B, N, D = 2, 116, 116
    C = 4
    key = jax.random.PRNGKey(0)
    x = jax.random.normal(key, (B, N, D), dtype=jnp.float32)

    node_features, assignments = spectral_clustering_forward(x, cluster_number=C, gamma=1.0)
    jax.block_until_ready((node_features, assignments))

    assert node_features.shape == (B, N, C), node_features.shape
    assert node_features.dtype == jnp.float32
    assert assignments.shape == (B, N), assignments.shape
    assert assignments.dtype == jnp.int32
    assert bool(jnp.all((assignments >= 0) & (assignments < C)))

    print("KERNEL_OK")
</pallas_src>

<mosaic_0001>
module attributes {stable_mosaic.version = 11 : i64} {
  func.func @_rbf_laplacian_kernel(%arg0: i32, %arg1: memref<1x128x128xf32, #tpu.memory_space<vmem>>, %arg2: memref<1x128x128xf32, #tpu.memory_space<vmem>>) attributes {dimension_semantics = [#tpu.dimension_semantics<parallel>], iteration_bounds = array<i64: 2>, scalar_prefetch = 0 : i64, scratch_operands = 0 : i64, tpu.core_type = #tpu.core_type<tc>, window_params = [{transform_indices = @transform_0, window_bounds = array<i64: 1, 128, 128>}, {transform_indices = @transform_1, window_bounds = array<i64: 1, 128, 128>}]} {
    %c0 = arith.constant 0 : index
    %c0_0 = arith.constant 0 : index
    %c0_1 = arith.constant 0 : index
    %0 = vector.load %arg1[%c0, %c0_0, %c0_1] : memref<1x128x128xf32, #tpu.memory_space<vmem>>, vector<1x128x128xf32>
    %1 = vector.shape_cast %0 : vector<1x128x128xf32> to vector<128x128xf32>
    %2 = arith.mulf %1, %1 : vector<128x128xf32>
    %cst = arith.constant dense<0.000000e+00> : vector<128xf32>
    %3 = vector.multi_reduction <add>, %2, %cst [1] : vector<128x128xf32> to vector<128xf32>
    %cst_2 = arith.constant dense<0.000000e+00> : vector<128x128xf32>
    %4 = tpu.matmul %1, %1, %cst_2 {dimension_numbers = #tpu.dot_dimension_numbers<[1], [1], [0], [0], [0, 0, 1, 0], [], []>} : vector<128x128xf32>, vector<128x128xf32>, vector<128x128xf32> -> vector<128x128xf32>
    %5 = vector.shape_cast %3 : vector<128xf32> to vector<128x1xf32>
    %6 = vector.shape_cast %3 : vector<128xf32> to vector<1x128xf32>
    %7 = vector.broadcast %5 : vector<128x1xf32> to vector<128x128xf32>
    %8 = vector.broadcast %6 : vector<1x128xf32> to vector<128x128xf32>
    %9 = arith.addf %7, %8 : vector<128x128xf32>
    %cst_3 = arith.constant 2.000000e+00 : f32
    %10 = vector.broadcast %cst_3 : f32 to vector<128x128xf32>
    %11 = arith.mulf %10, %4 : vector<128x128xf32>
    %12 = arith.subf %9, %11 : vector<128x128xf32>
    %cst_4 = arith.constant 0.000000e+00 : f32
    %13 = vector.broadcast %cst_4 : f32 to vector<128x128xf32>
    %14 = arith.maximumf %12, %13 : vector<128x128xf32>
    %cst_5 = arith.constant -1.000000e+00 : f32
    %15 = vector.broadcast %cst_5 : f32 to vector<128x128xf32>
    %16 = arith.mulf %15, %14 : vector<128x128xf32>
    %17 = math.exp %16 : vector<128x128xf32>
    %18 = tpu.iota {dimensions = array<i32: 0>} : vector<128x1xi32>
    %19 = tpu.iota {dimensions = array<i32: 1>} : vector<1x128xi32>
    %c116_i32 = arith.constant 116 : i32
    %20 = vector.broadcast %c116_i32 : i32 to vector<1x128xi32>
    %21 = arith.cmpi slt, %19, %20 : vector<1x128xi32>
    %cst_6 = arith.constant 0.000000e+00 : f32
    %22 = vector.shape_cast %21 : vector<1x128xi1> to vector<1x128xi1>
    %23 = vector.broadcast %22 : vector<1x128xi1> to vector<128x128xi1>
    %24 = vector.broadcast %cst_6 : f32 to vector<128x128xf32>
    %25 = arith.select %23, %17, %24 : vector<128x128xi1>, vector<128x128xf32>
    %cst_7 = arith.constant dense<0.000000e+00> : vector<128xf32>
    %26 = vector.multi_reduction <add>, %25, %cst_7 [1] : vector<128x128xf32> to vector<128xf32>
    %27 = vector.shape_cast %26 : vector<128xf32> to vector<128x1xf32>
    %28 = vector.broadcast %18 : vector<128x1xi32> to vector<128x128xi32>
    %29 = vector.broadcast %19 : vector<1x128xi32> to vector<128x128xi32>
    %30 = arith.cmpi eq, %28, %29 : vector<128x128xi32>
    %31 = vector.broadcast %27 : vector<128x1xf32> to vector<128x128xf32>
    %32 = arith.subf %31, %25 : vector<128x128xf32>
    %cst_8 = arith.constant 0.000000e+00 : f32
    %33 = vector.broadcast %cst_8 : f32 to vector<128x128xf32>
    %34 = arith.subf %33, %25 : vector<128x128xf32>
    %35 = arith.select %30, %32, %34 : vector<128x128xi1>, vector<128x128xf32>
    %c0_9 = arith.constant 0 : index
    %c0_10 = arith.constant 0 : index
    %c0_11 = arith.constant 0 : index
    %36 = vector.load %arg2[%c0_9, %c0_10, %c0_11] : memref<1x128x128xf32, #tpu.memory_space<vmem>>, vector<1x128x128xf32>
    %37 = vector.shape_cast %36 : vector<1x128x128xf32> to vector<128x128xf32>
    %38 = vector.shape_cast %35 : vector<128x128xf32> to vector<1x128x128xf32>
    tpu.vector_store %arg2[%c0_9, %c0_10, %c0_11], %38 {strides = array<i32>} : memref<1x128x128xf32, #tpu.memory_space<vmem>>, vector<1x128x128xf32>,
    return
  }
  func.func @transform_0(%arg0: i32) -> (i32, i32, i32) {
    %c0_i32 = arith.constant 0 : i32
    %c0_i32_0 = arith.constant 0 : i32
    %c0_i32_1 = arith.constant 0 : i32
    return %arg0, %c0_i32, %c0_i32_0 : i32, i32, i32
  }
  func.func @transform_1(%arg0: i32) -> (i32, i32, i32) {
    %c0_i32 = arith.constant 0 : i32
    %c0_i32_0 = arith.constant 0 : i32
    %c0_i32_1 = arith.constant 0 : i32
    return %arg0, %c0_i32, %c0_i32_0 : i32, i32, i32
  }
}

</mosaic_0001>

<llo_original>
// kernel: tpu_custom_call.1
$region0: #{tpu_custom_call.1}
  #allocation0 [shape = 'u32[]', space=smem, size = 0x4, offset = 0x4, fixed_abs, tag = 'smem constant byte address 0x4 - core index']
  #allocation1 [shape = 'u32[72,128]{1,0:T(1,128)}', space=vmem, size = 0x9000, scoped, tag = 'internal scratch']
  %s0 = inlined_call_operand.hbm [shape: f32[2,128,128], index: 0, kind: input, shape index: {}]
  %s1 = inlined_call_operand.hbm [shape: f32[2,128,128], index: 1, kind: output, shape index: {}]
  %s2 = sld [smem:[#allocation0]]
  $region41: #{tpu_custom_call.1} parent=0
    _
  %s4 = ssub.s32 1, %s2
  %s5 = scalar_select 0, %s4, %s2
  $region1: #{tpu_custom_call.1} parent=0
    #allocation2 [shape = 'u8[131072]{0}', space=vmem, size = 0x20000, scoped, tag = 'input window, operand 0']
    #allocation3 [shape = 's32[2]{0}', space=sflag, size = 0x8, scoped, tag = 'scoped memory for tpu_custom_call.1']
    #allocation4 [shape = 's32[2]{0}', space=sflag, size = 0x8, scoped, tag = 'scoped memory for tpu_custom_call.1']
    #allocation5 [shape = 'u8[131072]{0}', space=vmem, size = 0x20000, scoped, tag = 'output window, operand 0']
    %6 = vsyncpa [#allocation3], 0
    %s7 = scalar_lea.sflag [#allocation3], 1
    %8 = vsyncpa %s7, 0
    %9 = vsyncpa [#allocation4], 0
    %s10 = scalar_lea.sflag [#allocation4], 1
    %11 = vsyncpa %s10, 0
    loop: start=0, step=1, limit=4
    $region2: #{tpu_custom_call.1} parent=1 // loop_pre_header
      _
    $region3: #{tpu_custom_call.1} parent=1 // loop_header
      %s13 = sphi 0, %s17
      %p14 = scmp.ge.s32.totalorder %s13, 4
      %s23 = sphi 0, %s25
      %s26 = sphi 0, %s23
      %s27 = sphi 0, %s26
      %s43 = sphi 0, %s27
      %s49 = sphi 0, %s51
      %s52 = sphi 0, %s49
      %s53 = sphi 0, %s52
      %s69 = sphi 0, %s53
    $region4: #{tpu_custom_call.1} parent=1 // loop_header_branch
      %16 = sbr.rel (%p14) target = $region8
    $region5: #{tpu_custom_call.1} parent=1 // loop_body
      %s18 = ssub.s32 %s13, 1
      %s19 = ssub.s32 %s13, 2
      %s20 = sadd.s32 %s13, 1
      %s21 = ssub.s32 %s13, %s20
      %p22 = scmp.eq.s32.totalorder %s21, 0
      %s24 = sadd.s32 %s23, 1
      %s25 = scalar_select %p22, %s23, %s24
      %p28 = pneg %p22
      %p29 = scmp.eq.s32.totalorder %s13, 1
      %p30 = por %p28, %p29
      %p31 = scmp.ne.s32.totalorder %s23, %s26
      %p32 = scmp.eq.s32.totalorder %s13, 0
      %p33 = por %p31, %p32
      %p34 = scmp.ne.s32.totalorder %s23, %s26
      %p35 = scmp.eq.s32.totalorder %s18, 1
      %p36 = por %p34, %p35
      %p37 = scmp.ne.s32.totalorder %s26, %s27
      %p38 = scmp.eq.s32.totalorder %s18, 0
      %p39 = por %p37, %p38
      %p40 = scmp.ne.s32.totalorder %s26, %s27
      %p41 = scmp.eq.s32.totalorder %s19, 1
      %p42 = por %p40, %p41
      %p44 = scmp.ne.s32.totalorder %s27, %s43
      %p45 = scmp.eq.s32.totalorder %s19, 0
      %p46 = por %p44, %p45
      %s47 = ssub.s32 %s13, %s20
      %p48 = scmp.eq.s32.totalorder %s47, 0
      %s50 = sadd.s32 %s49, 1
      %s51 = scalar_select %p48, %s49, %s50
      %p54 = pneg %p48
      %p55 = scmp.eq.s32.totalorder %s13, 1
      %p56 = por %p54, %p55
      %p57 = scmp.ne.s32.totalorder %s49, %s52
      %p58 = scmp.eq.s32.totalorder %s13, 0
      %p59 = por %p57, %p58
      %p60 = scmp.ne.s32.totalorder %s49, %s52
      %p61 = scmp.eq.s32.totalorder %s18, 1
      %p62 = por %p60, %p61
      %p63 = scmp.ne.s32.totalorder %s52, %s53
      %p64 = scmp.eq.s32.totalorder %s18, 0
      %p65 = por %p63, %p64
      %p66 = scmp.ne.s32.totalorder %s52, %s53
      %p67 = scmp.eq.s32.totalorder %s19, 1
      %p68 = por %p66, %p67
      %p70 = scmp.ne.s32.totalorder %s53, %s69
      %p71 = scmp.eq.s32.totalorder %s19, 0
      %p72 = por %p70, %p71
      %p73 = scmp.le.s32.totalorder 1, %s13
      %p74 = scmp.lt.s32.totalorder %s13, 3
      %p75 = pnand %p73, %p74
      %p76 = pneg %p75
      // Predicated region
      $region9: #{tpu_custom_call.1} parent=5 // pred_check
        _
      $region10: #{tpu_custom_call.1} parent=5 // pred_check_branch
        %78 = sbr.rel (%p75) target = $region12
      $region11: #{tpu_custom_call.1} parent=5 // pred_region
        %s79 = ssub.s32 %s13, 1
      $region12: #{tpu_custom_call.1} parent=5 // pred_fallthru
        _
      %p80 = scmp.lt.s32.totalorder %s13, 2
      // Predicated region
      $region13: #{tpu_custom_call.1} parent=5 // pred_check
        %p81 = pneg %p80
      $region14: #{tpu_custom_call.1} parent=5 // pred_check_branch
        %83 = sbr.rel (%p81) target = $region16
      $region15: #{tpu_custom_call.1} parent=5 // pred_region
        // Predicated region
        $region17: #{tpu_custom_call.1} parent=15 // pred_check
          %p84 = pneg %p33
        $region18: #{tpu_custom_call.1} parent=15 // pred_check_branch
          %86 = sbr.rel (%p84) target = $region20
        $region19: #{tpu_custom_call.1} parent=15 // pred_region
          %s87 = sand.u32 %s23, 1
          %s88 = scalar_lea.sflag [#allocation3], %s87
          %s89 = sand.u32 %s23, 1
          %s90 = smul.addr %s89, 128
          %s91 = scalar_lea.vmem [#allocation2], %s90
          %93 = vsyncadd %s88, 0
          %s94 = smul.addr %s13, 16
          %s95 = smul.addr %s94, 8
          %s96 = scalar_lea.hbm %s0, %s95
          %s97 = sshll.u32 %s96, 4
          %s98 = int_to_ptr.hbm [resolvable:$true] %s97
          %s99 = sshll.u32 %s91, 4
          %s100 = int_to_ptr.vmem [resolvable:$true] %s99
          %105 = dma.hbm_to_vmem [thread:$0]  %s98, 2048, %s100, %s88, 128, 128, 8
        $region20: #{tpu_custom_call.1} parent=15 // pred_fallthru
          _
      $region16: #{tpu_custom_call.1} parent=5 // pred_fallthru
        _
      %p106 = scmp.le.s32.totalorder 1, %s13
      %p107 = scmp.lt.s32.totalorder %s13, 3
      %p108 = pnand %p106, %p107
      %p109 = pneg %p108
      // Predicated region
      $region21: #{tpu_custom_call.1} parent=5 // pred_check
        _
      $region22: #{tpu_custom_call.1} parent=5 // pred_check_branch
        %111 = sbr.rel (%p108) target = $region24
      $region23: #{tpu_custom_call.1} parent=5 // pred_region
        %s112 = ssub.s32 %s13, 1
        %s113 = sand.u32 %s26, 1
        %s114 = scalar_lea.sflag [#allocation3], %s113
        %s115 = sand.u32 %s26, 1
        %s116 = smul.addr %s115, 128
        %s117 = scalar_lea.vmem [#allocation2], %s116
        // Predicated region
        $region25: #{tpu_custom_call.1} parent=23 // pred_check
          %p118 = pneg %p39
        $region26: #{tpu_custom_call.1} parent=23 // pred_check_branch
          %120 = sbr.rel (%p118) target = $region28
        $region27: #{tpu_custom_call.1} parent=23 // pred_region
          %122 = dma.done %s114, 2048
        $region28: #{tpu_custom_call.1} parent=23 // pred_fallthru
          _
        %s123 = sand.u32 %s26, 1
        %s124 = scalar_lea.sflag [#allocation3], %s123
        %s125 = sand.u32 %s26, 1
        %s126 = smul.addr %s125, 128
        %s127 = scalar_lea.vmem [#allocation2], %s126
        %p128 = pneg %p39
        %p129 = pneg %p36
        %p130 = pneg %p65
        %p131 = pneg %p62
        %s132 = sand.u32 %s52, 1
        %s133 = scalar_lea.sflag [#allocation4], %s132
        %s134 = sand.u32 %s52, 1
        %s135 = smul.addr %s134, 128
        %s136 = scalar_lea.vmem [#allocation5], %s135
        %v137 = vld [vmem:[%s117] sm:$0xff]
        %v138 = vld [vmem:[%s117 + $0x8] sm:$0xff]
        %v139 = vld [vmem:[%s117 + $0x10] sm:$0xff]
        %v140 = vld [vmem:[%s117 + $0x18] sm:$0xff]
        %v141 = vld [vmem:[%s117 + $0x20] sm:$0xff]
        %v142 = vld [vmem:[%s117 + $0x28] sm:$0xff]
        %v143 = vld [vmem:[%s117 + $0x30] sm:$0xff]
        %v144 = vld [vmem:[%s117 + $0x38] sm:$0xff]
        %v145 = vld [vmem:[%s117 + $0x40] sm:$0xff]
        %v146 = vld [vmem:[%s117 + $0x48] sm:$0xff]
        %v147 = vld [vmem:[%s117 + $0x50] sm:$0xff]
        %v148 = vld [vmem:[%s117 + $0x58] sm:$0xff]
        %v149 = vld [vmem:[%s117 + $0x60] sm:$0xff]
        %v150 = vld [vmem:[%s117 + $0x68] sm:$0xff]
        %v151 = vld [vmem:[%s117 + $0x70] sm:$0xff]
        %v152 = vld [vmem:[%s117 + $0x78] sm:$0xff]
        %v153 = vmul.f32 %v137, %v137
        %v154 = vmul.f32 %v138, %v138
        %v155 = vmul.f32 %v139, %v139
        %v156 = vmul.f32 %v140, %v140
        %v157 = vmul.f32 %v141, %v141
        %v158 = vmul.f32 %v142, %v142
        %v159 = vmul.f32 %v143, %v143
        %v160 = vmul.f32 %v144, %v144
        %v161 = vmul.f32 %v145, %v145
        %v162 = vmul.f32 %v146, %v146
        %v163 = vmul.f32 %v147, %v147
        %v164 = vmul.f32 %v148, %v148
        %v165 = vmul.f32 %v149, %v149
        %v166 = vmul.f32 %v150, %v150
        %v167 = vmul.f32 %v151, %v151
        %v168 = vmul.f32 %v152, %v152
        %169 = vadd.xlane.f32.xlu0 %v153
        %v170 = vpop.xlane.xlu0 %169
        %171 = vadd.xlane.f32.xlu0 %v154
        %v172 = vpop.xlane.xlu0 %171
        %173 = vadd.xlane.f32.xlu0 %v155
        %v174 = vpop.xlane.xlu0 %173
        %175 = vadd.xlane.f32.xlu0 %v156
        %v176 = vpop.xlane.xlu0 %175
        %177 = vadd.xlane.f32.xlu0 %v157
        %v178 = vpop.xlane.xlu0 %177
        %179 = vadd.xlane.f32.xlu0 %v158
        %v180 = vpop.xlane.xlu0 %179
        %181 = vadd.xlane.f32.xlu0 %v159
        %v182 = vpop.xlane.xlu0 %181
        %183 = vadd.xlane.f32.xlu0 %v160
        %v184 = vpop.xlane.xlu0 %183
        %185 = vadd.xlane.f32.xlu0 %v161
        %v186 = vpop.xlane.xlu0 %185
        %187 = vadd.xlane.f32.xlu0 %v162
        %v188 = vpop.xlane.xlu0 %187
        %189 = vadd.xlane.f32.xlu0 %v163
        %v190 = vpop.xlane.xlu0 %189
        %191 = vadd.xlane.f32.xlu0 %v164
        %v192 = vpop.xlane.xlu0 %191
        %193 = vadd.xlane.f32.xlu0 %v165
        %v194 = vpop.xlane.xlu0 %193
        %195 = vadd.xlane.f32.xlu0 %v166
        %v196 = vpop.xlane.xlu0 %195
        %197 = vadd.xlane.f32.xlu0 %v167
        %v198 = vpop.xlane.xlu0 %197
        %199 = vadd.xlane.f32.xlu0 %v168
        %v200 = vpop.xlane.xlu0 %199
        %201 = vmatpush.xpose.msra.mxu0 %v152
        %202 = vmatpush.xpose.msra.mxu0 %v151
        %203 = vmatpush.xpose.msra.mxu0 %v150
        %204 = vmatpush.xpose.msra.mxu0 %v149
        %205 = vmatpush.xpose.msra.mxu0 %v148
        %206 = vmatpush.xpose.msra.mxu0 %v147
        %207 = vmatpush.xpose.msra.mxu0 %v146
        %208 = vmatpush.xpose.msra.mxu0 %v145
        %209 = vmatpush.xpose.msra.mxu0 %v144
        %210 = vmatpush.xpose.msra.mxu0 %v143
        %211 = vmatpush.xpose.msra.mxu0 %v142
        %212 = vmatpush.xpose.msra.mxu0 %v141
        %213 = vmatpush.xpose.msra.mxu0 %v140
        %214 = vmatpush.xpose.msra.mxu0 %v139
        %215 = vmatpush.xpose.msra.mxu0 %v138
        %216 = vmatpush.xpose.msra.mxu0 %v137
        %217 = vmatmul.f32.gmra.mxu0 %v137
        %v218 = vpop.f32.mrf.mxu0
        %v219 = vadd.f32 0.0, %v218
        %220 = vmatmul.f32.gmra.mxu0 %v138
        %v221 = vpop.f32.mrf.mxu0
        %v222 = vadd.f32 0.0, %v221
        %223 = vmatmul.f32.gmra.mxu0 %v139
        %v224 = vpop.f32.mrf.mxu0
        %v225 = vadd.f32 0.0, %v224
        %226 = vmatmul.f32.gmra.mxu0 %v140
        %v227 = vpop.f32.mrf.mxu0
        %v228 = vadd.f32 0.0, %v227
        %229 = vmatmul.f32.gmra.mxu0 %v141
        %v230 = vpop.f32.mrf.mxu0
        %v231 = vadd.f32 0.0, %v230
        %232 = vmatmul.f32.gmra.mxu0 %v142
        %v233 = vpop.f32.mrf.mxu0
        %v234 = vadd.f32 0.0, %v233
        %235 = vmatmul.f32.gmra.mxu0 %v143
        %v236 = vpop.f32.mrf.mxu0
        %v237 = vadd.f32 0.0, %v236
        %238 = vmatmul.f32.gmra.mxu0 %v144
        %v239 = vpop.f32.mrf.mxu0
        %v240 = vadd.f32 0.0, %v239
        %241 = vmatmul.f32.gmra.mxu0 %v145
        %v242 = vpop.f32.mrf.mxu0
        %v243 = vadd.f32 0.0, %v242
        %244 = vmatmul.f32.gmra.mxu0 %v146
        %v245 = vpop.f32.mrf.mxu0
        %v246 = vadd.f32 0.0, %v245
        %247 = vmatmul.f32.gmra.mxu0 %v147
        %v248 = vpop.f32.mrf.mxu0
        %v249 = vadd.f32 0.0, %v248
        %250 = vmatmul.f32.gmra.mxu0 %v148
        %v251 = vpop.f32.mrf.mxu0
        %v252 = vadd.f32 0.0, %v251
        %253 = vmatmul.f32.gmra.mxu0 %v149
        %v254 = vpop.f32.mrf.mxu0
        %v255 = vadd.f32 0.0, %v254
        %256 = vmatmul.f32.gmra.mxu0 %v150
        %v257 = vpop.f32.mrf.mxu0
        %v258 = vadd.f32 0.0, %v257
        %259 = vmatmul.f32.gmra.mxu0 %v151
        %v260 = vpop.f32.mrf.mxu0
        %v261 = vadd.f32 0.0, %v260
        %262 = vmatmul.f32.gmra.mxu0 %v152
        %v263 = vpop.f32.mrf.mxu0
        %v264 = vadd.f32 0.0, %v263
        %265 = vdwg.mxu0
        %v282 = vlaneseq
        %v283 = vand.u32 %v282, 127
        %v284 = vperm.slane %v170, %v283
        %v285 = vadd.s32 %v283, 4294967288
        %v286 = vperm.slane %v172, %v285
        %vm287 = vcmask 130112
        %v288 = vsel %vm287, %v286, %v284
        %v289 = vadd.s32 %v283, 4294967280
        %v290 = vperm.slane %v174, %v289
        %vm291 = vcmask 195712
        %v292 = vsel %vm291, %v290, %v288
        %v293 = vadd.s32 %v283, 4294967272
        %v294 = vperm.slane %v176, %v293
        %vm295 = vcmask 261312
        %v296 = vsel %vm295, %v294, %v292
        %v297 = vadd.s32 %v283, 4294967264
        %v298 = vperm.slane %v178, %v297
        %vm299 = vcmask 326912
        %v300 = vsel %vm299, %v298, %v296
        %v301 = vadd.s32 %v283, 4294967256
        %v302 = vperm.slane %v180, %v301
        %vm303 = vcmask 392512
        %v304 = vsel %vm303, %v302, %v300
        %v305 = vadd.s32 %v283, 4294967248
        %v306 = vperm.slane %v182, %v305
        %vm307 = vcmask 458112
        %v308 = vsel %vm307, %v306, %v304
        %v309 = vadd.s32 %v283, 4294967240
        %v310 = vperm.slane %v184, %v309
        %vm311 = vcmask 523712
        %v312 = vsel %vm311, %v310, %v308
        %v313 = vadd.s32 %v283, 4294967232
        %v314 = vperm.slane %v186, %v313
        %vm315 = vcmask 589312
        %v316 = vsel %vm315, %v314, %v312
        %v317 = vadd.s32 %v283, 4294967224
        %v318 = vperm.slane %v188, %v317
        %vm319 = vcmask 654912
        %v320 = vsel %vm319, %v318, %v316
        %v321 = vadd.s32 %v283, 4294967216
        %v322 = vperm.slane %v190, %v321
        %vm323 = vcmask 720512
        %v324 = vsel %vm323, %v322, %v320
        %v325 = vadd.s32 %v283, 4294967208
        %v326 = vperm.slane %v192, %v325
        %vm327 = vcmask 786112
        %v328 = vsel %vm327, %v326, %v324
        %v329 = vadd.s32 %v283, 4294967200
        %v330 = vperm.slane %v194, %v329
        %vm331 = vcmask 851712
        %v332 = vsel %vm331, %v330, %v328
        %v333 = vadd.s32 %v283, 4294967192
        %v334 = vperm.slane %v196, %v333
        %vm335 = vcmask 917312
        %v336 = vsel %vm335, %v334, %v332
        %v337 = vadd.s32 %v283, 4294967184
        %v338 = vperm.slane %v198, %v337
        %vm339 = vcmask 982912
        %v340 = vsel %vm339, %v338, %v336
        %v341 = vadd.s32 %v283, 4294967176
        %v342 = vperm.slane %v200, %v341
        %vm343 = vcmask 1048512
        %v344 = vsel %vm343, %v342, %v340
        %vm345 = vcmask 1042434
        %v346 = vsel %vm345, %v344, %v344
        %vm347 = vcmask 1043459
        %v348 = vsel %vm347, %v344, %v346
        %vm349 = vcmask 1044484
        %v350 = vsel %vm349, %v344, %v348
        %vm351 = vcmask 1045509
        %v352 = vsel %vm351, %v344, %v350
        %vm353 = vcmask 1046534
        %v354 = vsel %vm353, %v344, %v352
        %vm355 = vcmask 1047559
        %v356 = vsel %vm355, %v344, %v354
        %v358 = vadd.f32 %v170, %v356
        %v359 = vadd.f32 %v172, %v356
        %v360 = vadd.f32 %v174, %v356
        %v361 = vadd.f32 %v176, %v356
        %v362 = vadd.f32 %v178, %v356
        %v363 = vadd.f32 %v180, %v356
        %v364 = vadd.f32 %v182, %v356
        %v365 = vadd.f32 %v184, %v356
        %v366 = vadd.f32 %v186, %v356
        %v367 = vadd.f32 %v188, %v356
        %v368 = vadd.f32 %v190, %v356
        %v369 = vadd.f32 %v192, %v356
        %v370 = vadd.f32 %v194, %v356
        %v371 = vadd.f32 %v196, %v356
        %v372 = vadd.f32 %v198, %v356
        %v373 = vadd.f32 %v200, %v356
        %v374 = vmul.f32 %v219, 2.0
        %v375 = vmul.f32 %v222, 2.0
        %v376 = vmul.f32 %v225, 2.0
        %v377 = vmul.f32 %v228, 2.0
        %v378 = vmul.f32 %v231, 2.0
        %v379 = vmul.f32 %v234, 2.0
        %v380 = vmul.f32 %v237, 2.0
        %v381 = vmul.f32 %v240, 2.0
        %v382 = vmul.f32 %v243, 2.0
        %v383 = vmul.f32 %v246, 2.0
        %v384 = vmul.f32 %v249, 2.0
        %v385 = vmul.f32 %v252, 2.0
        %v386 = vmul.f32 %v255, 2.0
        %v387 = vmul.f32 %v258, 2.0
        %v388 = vmul.f32 %v261, 2.0
        %v389 = vmul.f32 %v264, 2.0
        %v390 = vsub.f32 %v358, %v374
        %v391 = vsub.f32 %v359, %v375
        %v392 = vsub.f32 %v360, %v376
        %v393 = vsub.f32 %v361, %v377
        %v394 = vsub.f32 %v362, %v378
        %v395 = vsub.f32 %v363, %v379
        %v396 = vsub.f32 %v364, %v380
        %v397 = vsub.f32 %v365, %v381
        %v398 = vsub.f32 %v366, %v382
        %v399 = vsub.f32 %v367, %v383
        %v400 = vsub.f32 %v368, %v384
        %v401 = vsub.f32 %v369, %v385
        %v402 = vsub.f32 %v370, %v386
        %v403 = vsub.f32 %v371, %v387
        %v404 = vsub.f32 %v372, %v388
        %v405 = vsub.f32 %v373, %v389
        %v406 = vmax.f32 %v390, 0.0
        %v407 = vmax.f32 %v391, 0.0
        %v408 = vmax.f32 %v392, 0.0
        %v409 = vmax.f32 %v393, 0.0
        %v410 = vmax.f32 %v394, 0.0
        %v411 = vmax.f32 %v395, 0.0
        %v412 = vmax.f32 %v396, 0.0
        %v413 = vmax.f32 %v397, 0.0
        %v414 = vmax.f32 %v398, 0.0
        %v415 = vmax.f32 %v399, 0.0
        %v416 = vmax.f32 %v400, 0.0
        %v417 = vmax.f32 %v401, 0.0
        %v418 = vmax.f32 %v402, 0.0
        %v419 = vmax.f32 %v403, 0.0
        %v420 = vmax.f32 %v404, 0.0
        %v421 = vmax.f32 %v405, 0.0
        %v422 = vmul.f32 %v406, -1.0
        %v423 = vmul.f32 %v407, -1.0
        %v424 = vmul.f32 %v408, -1.0
        %v425 = vmul.f32 %v409, -1.0
        %v426 = vmul.f32 %v410, -1.0
        %v427 = vmul.f32 %v411, -1.0
        %v428 = vmul.f32 %v412, -1.0
        %v429 = vmul.f32 %v413, -1.0
        %v430 = vmul.f32 %v414, -1.0
        %v431 = vmul.f32 %v415, -1.0
        %v432 = vmul.f32 %v416, -1.0
        %v433 = vmul.f32 %v417, -1.0
        %v434 = vmul.f32 %v418, -1.0
        %v435 = vmul.f32 %v419, -1.0
        %v436 = vmul.f32 %v420, -1.0
        %v437 = vmul.f32 %v421, -1.0
        %v438 = vmul.f32 %v422, 1.442695
        %v439 = vpow.pop %v438
        %v440 = vmul.f32 %v423, 1.442695
        %v441 = vpow.pop %v440
        %v442 = vmul.f32 %v424, 1.442695
        %v443 = vpow.pop %v442
        %v444 = vmul.f32 %v425, 1.442695
        %v445 = vpow.pop %v444
        %v446 = vmul.f32 %v426, 1.442695
        %v447 = vpow.pop %v446
        %v448 = vmul.f32 %v427, 1.442695
        %v449 = vpow.pop %v448
        %v450 = vmul.f32 %v428, 1.442695
        %v451 = vpow.pop %v450
        %v452 = vmul.f32 %v429, 1.442695
        %v453 = vpow.pop %v452
        %v454 = vmul.f32 %v430, 1.442695
        %v455 = vpow.pop %v454
        %v456 = vmul.f32 %v431, 1.442695
        %v457 = vpow.pop %v456
        %v458 = vmul.f32 %v432, 1.442695
        %v459 = vpow.pop %v458
        %v460 = vmul.f32 %v433, 1.442695
        %v461 = vpow.pop %v460
        %v462 = vmul.f32 %v434, 1.442695
        %v463 = vpow.pop %v462
        %v464 = vmul.f32 %v435, 1.442695
        %v465 = vpow.pop %v464
        %v466 = vmul.f32 %v436, 1.442695
        %v467 = vpow.pop %v466
        %v468 = vmul.f32 %v437, 1.442695
        %v469 = vpow.pop %v468
        %v470 = vlaneseq
        %v471 = vshrl.u32 %v470, 7
        %v472 = vadd.s32 %v471, 8
        %v473 = vadd.s32 %v471, 16
        %v474 = vadd.s32 %v471, 24
        %v475 = vadd.s32 %v471, 32
        %v476 = vadd.s32 %v471, 40
        %v477 = vadd.s32 %v471, 48
        %v478 = vadd.s32 %v471, 56
        %v479 = vadd.s32 %v471, 64
        %v480 = vadd.s32 %v471, 72
        %v481 = vadd.s32 %v471, 80
        %v482 = vadd.s32 %v471, 88
        %v483 = vadd.s32 %v471, 96
        %v484 = vadd.s32 %v471, 104
        %v485 = vadd.s32 %v471, 112
        %v486 = vadd.s32 %v471, 120
        %vm487 = vcmp.lt.s32.totalorder %v283, 116
        %v488 = vsel %vm487, 1, 0
        %vm489 = vcmp.eq.s32.totalorder %v488, 1
        %v490 = vsel %vm489, %v439, 0.0
        %v491 = vsel %vm489, %v441, 0.0
        %v492 = vsel %vm489, %v443, 0.0
        %v493 = vsel %vm489, %v445, 0.0
        %v494 = vsel %vm489, %v447, 0.0
        %v495 = vsel %vm489, %v449, 0.0
        %v496 = vsel %vm489, %v451, 0.0
        %v497 = vsel %vm489, %v453, 0.0
        %v498 = vsel %vm489, %v455, 0.0
        %v499 = vsel %vm489, %v457, 0.0
        %v500 = vsel %vm489, %v459, 0.0
        %v501 = vsel %vm489, %v461, 0.0
        %v502 = vsel %vm489, %v463, 0.0
        %v503 = vsel %vm489, %v465, 0.0
        %v504 = vsel %vm489, %v467, 0.0
        %v505 = vsel %vm489, %v469, 0.0
        %506 = vadd.xlane.f32.xlu0 %v490
        %v507 = vpop.xlane.xlu0 %506
        %508 = vadd.xlane.f32.xlu0 %v491
        %v509 = vpop.xlane.xlu0 %508
        %510 = vadd.xlane.f32.xlu0 %v492
        %v511 = vpop.xlane.xlu0 %510
        %512 = vadd.xlane.f32.xlu0 %v493
        %v513 = vpop.xlane.xlu0 %512
        %514 = vadd.xlane.f32.xlu0 %v494
        %v515 = vpop.xlane.xlu0 %514
        %516 = vadd.xlane.f32.xlu0 %v495
        %v517 = vpop.xlane.xlu0 %516
        %518 = vadd.xlane.f32.xlu0 %v496
        %v519 = vpop.xlane.xlu0 %518
        %520 = vadd.xlane.f32.xlu0 %v497
        %v521 = vpop.xlane.xlu0 %520
        %522 = vadd.xlane.f32.xlu0 %v498
        %v523 = vpop.xlane.xlu0 %522
        %524 = vadd.xlane.f32.xlu0 %v499
        %v525 = vpop.xlane.xlu0 %524
        %526 = vadd.xlane.f32.xlu0 %v500
        %v527 = vpop.xlane.xlu0 %526
        %528 = vadd.xlane.f32.xlu0 %v501
        %v529 = vpop.xlane.xlu0 %528
        %530 = vadd.xlane.f32.xlu0 %v502
        %v531 = vpop.xlane.xlu0 %530
        %532 = vadd.xlane.f32.xlu0 %v503
        %v533 = vpop.xlane.xlu0 %532
        %534 = vadd.xlane.f32.xlu0 %v504
        %v535 = vpop.xlane.xlu0 %534
        %536 = vadd.xlane.f32.xlu0 %v505
        %v537 = vpop.xlane.xlu0 %536
        %vm538 = vcmp.eq.s32.totalorder %v471, %v283
        %vm539 = vcmp.eq.s32.totalorder %v472, %v283
        %vm540 = vcmp.eq.s32.totalorder %v473, %v283
        %vm541 = vcmp.eq.s32.totalorder %v474, %v283
        %vm542 = vcmp.eq.s32.totalorder %v475, %v283
        %vm543 = vcmp.eq.s32.totalorder %v476, %v283
        %vm544 = vcmp.eq.s32.totalorder %v477, %v283
        %vm545 = vcmp.eq.s32.totalorder %v478, %v283
        %vm546 = vcmp.eq.s32.totalorder %v479, %v283
        %vm547 = vcmp.eq.s32.totalorder %v480, %v283
        %vm548 = vcmp.eq.s32.totalorder %v481, %v283
        %vm549 = vcmp.eq.s32.totalorder %v482, %v283
        %vm550 = vcmp.eq.s32.totalorder %v483, %v283
        %vm551 = vcmp.eq.s32.totalorder %v484, %v283
        %vm552 = vcmp.eq.s32.totalorder %v485, %v283
        %vm553 = vcmp.eq.s32.totalorder %v486, %v283
        %v554 = vsub.f32 %v507, %v490
        %v555 = vsub.f32 %v509, %v491
        %v556 = vsub.f32 %v511, %v492
        %v557 = vsub.f32 %v513, %v493
        %v558 = vsub.f32 %v515, %v494
        %v559 = vsub.f32 %v517, %v495
        %v560 = vsub.f32 %v519, %v496
        %v561 = vsub.f32 %v521, %v497
        %v562 = vsub.f32 %v523, %v498
        %v563 = vsub.f32 %v525, %v499
        %v564 = vsub.f32 %v527, %v500
        %v565 = vsub.f32 %v529, %v501
        %v566 = vsub.f32 %v531, %v502
        %v567 = vsub.f32 %v533, %v503
        %v568 = vsub.f32 %v535, %v504
        %v569 = vsub.f32 %v537, %v505
        %v570 = vsub.f32 0.0, %v490
        %v571 = vsub.f32 0.0, %v491
        %v572 = vsub.f32 0.0, %v492
        %v573 = vsub.f32 0.0, %v493
        %v574 = vsub.f32 0.0, %v494
        %v575 = vsub.f32 0.0, %v495
        %v576 = vsub.f32 0.0, %v496
        %v577 = vsub.f32 0.0, %v497
        %v578 = vsub.f32 0.0, %v498
        %v579 = vsub.f32 0.0, %v499
        %v580 = vsub.f32 0.0, %v500
        %v581 = vsub.f32 0.0, %v501
        %v582 = vsub.f32 0.0, %v502
        %v583 = vsub.f32 0.0, %v503
        %v584 = vsub.f32 0.0, %v504
        %v585 = vsub.f32 0.0, %v505
        %v586 = vsel %vm538, %v554, %v570
        %v587 = vsel %vm539, %v555, %v571
        %v588 = vsel %vm540, %v556, %v572
        %v589 = vsel %vm541, %v557, %v573
        %v590 = vsel %vm542, %v558, %v574
        %v591 = vsel %vm543, %v559, %v575
        %v592 = vsel %vm544, %v560, %v576
        %v593 = vsel %vm545, %v561, %v577
        %v594 = vsel %vm546, %v562, %v578
        %v595 = vsel %vm547, %v563, %v579
        %v596 = vsel %vm548, %v564, %v580
        %v597 = vsel %vm549, %v565, %v581
        %v598 = vsel %vm550, %v566, %v582
        %v599 = vsel %vm551, %v567, %v583
        %v600 = vsel %vm552, %v568, %v584
        %v601 = vsel %vm553, %v569, %v585
        %602 = vst [vmem:[%s136] sm:$0xff] %v586
        %603 = vst [vmem:[%s136 + $0x8] sm:$0xff] %v587
        %604 = vst [vmem:[%s136 + $0x10] sm:$0xff] %v588
        %605 = vst [vmem:[%s136 + $0x18] sm:$0xff] %v589
        %606 = vst [vmem:[%s136 + $0x20] sm:$0xff] %v590
        %607 = vst [vmem:[%s136 + $0x28] sm:$0xff] %v591
        %608 = vst [vmem:[%s136 + $0x30] sm:$0xff] %v592
        %609 = vst [vmem:[%s136 + $0x38] sm:$0xff] %v593
        %610 = vst [vmem:[%s136 + $0x40] sm:$0xff] %v594
        %611 = vst [vmem:[%s136 + $0x48] sm:$0xff] %v595
        %612 = vst [vmem:[%s136 + $0x50] sm:$0xff] %v596
        %613 = vst [vmem:[%s136 + $0x58] sm:$0xff] %v597
        %614 = vst [vmem:[%s136 + $0x60] sm:$0xff] %v598
        %615 = vst [vmem:[%s136 + $0x68] sm:$0xff] %v599
        %616 = vst [vmem:[%s136 + $0x70] sm:$0xff] %v600
        %617 = vst [vmem:[%s136 + $0x78] sm:$0xff] %v601
        %s618 = sand.u32 %s52, 1
        %s619 = scalar_lea.sflag [#allocation4], %s618
        %s620 = sand.u32 %s52, 1
        %s621 = smul.addr %s620, 128
        %s622 = scalar_lea.vmem [#allocation5], %s621
        // Predicated region
        $region29: #{tpu_custom_call.1} parent=23 // pred_check
          %p623 = pneg %p62
        $region30: #{tpu_custom_call.1} parent=23 // pred_check_branch
          %625 = sbr.rel (%p623) target = $region32
        $region31: #{tpu_custom_call.1} parent=23 // pred_region
          %627 = vsyncadd %s619, 0
          %s628 = smul.addr %s18, 16
          %s629 = smul.addr %s628, 8
          %s630 = scalar_lea.hbm %s1, %s629
          %s631 = sshll.u32 %s622, 4
          %s632 = int_to_ptr.vmem [resolvable:$true] %s631
          %s633 = sshll.u32 %s630, 4
          %s634 = int_to_ptr.hbm [resolvable:$true] %s633
          %639 = dma.vmem_to_hbm [thread:$0]  %s632, 2048, %s634, %s619, 128, 128, 8
        $region32: #{tpu_custom_call.1} parent=23 // pred_fallthru
          _
      $region24: #{tpu_custom_call.1} parent=5 // pred_fallthru
        _
      %p640 = scmp.le.s32.totalorder 2, %s13
      // Predicated region
      $region33: #{tpu_custom_call.1} parent=5 // pred_check
        %p641 = pneg %p640
      $region34: #{tpu_custom_call.1} parent=5 // pred_check_branch
        %643 = sbr.rel (%p641) target = $region36
      $region35: #{tpu_custom_call.1} parent=5 // pred_region
        %s644 = ssub.s32 %s13, 2
        // Predicated region
        $region37: #{tpu_custom_call.1} parent=35 // pred_check
          %p645 = pneg %p68
        $region38: #{tpu_custom_call.1} parent=35 // pred_check_branch
          %647 = sbr.rel (%p645) target = $region40
        $region39: #{tpu_custom_call.1} parent=35 // pred_region
          %s648 = sand.u32 %s53, 1
          %s649 = scalar_lea.sflag [#allocation4], %s648
          %s650 = sand.u32 %s53, 1
          %s651 = smul.addr %s650, 128
          %s652 = scalar_lea.vmem [#allocation5], %s651
          %654 = dma.done %s649, 2048
        $region40: #{tpu_custom_call.1} parent=35 // pred_fallthru
          _
      $region36: #{tpu_custom_call.1} parent=5 // pred_fallthru
        _
    $region6: #{tpu_custom_call.1} parent=1 // loop_footer
      %s17 = sadd.s32 1, %s13
    $region7: #{tpu_custom_call.1} parent=1 // loop_footer_branch
      %12 = sbr.rel target = $region3
    $region8: #{tpu_custom_call.1} parent=1 // loop_exit
      _
    %655 = vsyncpa [#allocation3], 1
    %s656 = scalar_lea.sflag [#allocation3], 1
    %657 = vsyncpa %s656, 1
    %658 = vsyncpa [#allocation4], 1
    %s659 = scalar_lea.sflag [#allocation4], 1
    %660 = vsyncpa %s659, 1

</llo_original>
